<compile_context>
chip_gen: v7x
topology: tpu7x:2x2x1
jax: 0.10.0
libtpu: 0.0.40
codegen_flags: <defaults>
</compile_context>

<pallas_src>
import functools
import math

import numpy as np

import jax
import jax.numpy as jnp
from jax.experimental import pallas as pl
from jax.experimental.pallas import tpu as pltpu


def _shear_index_map(angle_deg, H, W):
    """Trace-time nearest-neighbour source map for a vertical shear.

    Returns:
      d_map:  (1, H*W) int32 per-output-pixel row shift (src_row - row), with
              an out-of-bounds sentinel (2*H) where the source row is outside [0, H).
      shifts: sorted tuple of the distinct in-bounds shift values.
      src_i, inb: (H, W) source-row indices and in-bounds mask (for reference checks).
    """
    t = math.tan(math.radians(angle_deg))
    col = np.arange(W, dtype=np.float32)
    row = np.arange(H, dtype=np.float32)
    # f32 math, round-half-to-even: matches grid_sample nearest (nearbyint) and
    # torchvision's tensor-path center convention ((W-1)/2 pixel-center grid).
    src = row[:, None] + np.float32(t) * (col[None, :] - np.float32((W - 1) / 2.0))
    src = np.rint(src.astype(np.float32))
    # Clamp before the int cast: tan() is huge near +-90 deg and float->int of
    # out-of-range values is implementation defined.
    src = np.clip(src, -1.0, float(H))
    src_i = src.astype(np.int32)
    inb = (src_i >= 0) & (src_i < H)
    sentinel = np.int32(2 * H)  # never equals a valid shift (|shift| <= H-1)
    d = np.where(inb, src_i - np.arange(H, dtype=np.int32)[:, None], sentinel)
    shifts = tuple(int(v) for v in np.unique(d[inb])) if bool(inb.any()) else ()
    return d.astype(np.int32).reshape(1, H * W), shifts, src_i, inb


def _shear_y_kernel(d_ref, x_ref, o_ref, *, shifts, W, L, chunk):
    # x_ref / o_ref: (tile_p, H*W) blocks in the image's native dtype.
    # d_ref:         (1, H*W) int32 row-shift map, identical for every plane.
    d = d_ref[...]
    n_chunks = x_ref.shape[0] // chunk  # wrapper guarantees chunk | tile_p

    def do_chunk(off):
        x = x_ref[pl.ds(off, chunk), :]
        acc = jnp.zeros_like(x)
        # Distinct-shift gather: each shift is a static lane rotation by
        # shift*W (XLU), selected with a (1, H*W) mask broadcast over rows.
        # Out-of-bounds pixels match no shift and stay 0 (zero fill).
        for dv in shifts:
            src = x if dv == 0 else pltpu.roll(x, shift=(-dv * W) % L, axis=1)
            acc = jnp.where(d == dv, src, acc)
        o_ref[pl.ds(off, chunk), :] = acc

    if n_chunks == 1:
        do_chunk(0)
    else:
        @pl.loop(0, n_chunks)
        def _(i):
            do_chunk(pl.multiple_of(i * chunk, chunk))


def shear_y(img, M):
    """Equivalent of ShearY(M).forward(img) for an NCHW tensor (nearest, fill=0)."""
    angle = 359.0 / 16.0 * M - 180.0          # same formula as ShearY.__init__
    N, C, H, W = img.shape
    P, L = N * C, H * W
    d_map, shifts, _, _ = _shear_index_map(angle, H, W)

    # Fast paths: near +-90 deg every source row is out of bounds -> all fill;
    # exact identity map -> no data movement needed at all.
    if not shifts:
        return jnp.zeros_like(img)
    if shifts == (0,) and bool(np.all(d_map == 0)):
        return img

    # Free reshape: (N, C, H, W) -> (N*C, H*W).  Lane axis = H*W (lane-dense),
    # many planes per block, shear becomes a per-pixel lane rotation by shift*W.
    x2 = img.reshape(P, L)

    itemsize = jnp.dtype(img.dtype).itemsize
    row_bytes = L * itemsize
    sub = max(8, 32 // max(itemsize, 1))      # native sublane multiple: 8/16/32

    # ~8 MiB of input per block; with in+out double-buffered (4 live blocks)
    # that is ~32 MiB of VMEM -> fits v5e/v6e (128 MiB) and v7x (64 MiB).
    block_budget = 8 << 20
    tile_p = max(1, block_budget // max(row_bytes, 1))
    if tile_p >= P:
        tile_p = P
    else:
        tile_p = max(sub, (tile_p // sub) * sub)
    # Give the megacore path (v7x: 2 TCs/chip, "parallel" grid axis) at least
    # two grid steps whenever the problem is big enough to split.
    if P >= 2 * sub:
        half_tile = ((((P + 1) // 2) + sub - 1) // sub) * sub
        tile_p = min(tile_p, half_tile)
    # TODO(synk): for planes so large that even an (8, H*W) block blows the
    # VMEM budget (e.g. >1K x 1K f32), switch to an (N*C, H, W) layout with W
    # tiled in multiples of 128; not needed for augmentation-sized images.

    # In-kernel chunk: ~32 KiB of x per chunk (x + acc + rolled src stay close
    # to vreg-resident), a multiple of the sublane packing, dividing tile_p.
    if tile_p % sub == 0:
        chunk = max(sub, min(tile_p, ((32 * 1024) // max(row_bytes, 1)) // sub * sub))
        while tile_p % chunk != 0:
            chunk -= sub
    else:
        chunk = tile_p  # tile_p == P and not sublane-aligned: single chunk

    vmem_need = 4 * tile_p * row_bytes + 2 * 4 * L + (1 << 20)
    vmem_limit = int(min(48 << 20, max(32 << 20, vmem_need)))

    kernel = functools.partial(_shear_y_kernel, shifts=shifts, W=W, L=L, chunk=chunk)
    out2 = pl.pallas_call(
        kernel,
        out_shape=jax.ShapeDtypeStruct((P, L), img.dtype),
        grid_spec=pltpu.PrefetchScalarGridSpec(
            num_scalar_prefetch=0,
            grid=(pl.cdiv(P, tile_p),),
            in_specs=[
                pl.BlockSpec((1, L), lambda i: (0, 0)),        # shift map (VMEM-resident)
                pl.BlockSpec((tile_p, L), lambda i: (i, 0)),   # image planes
            ],
            out_specs=pl.BlockSpec((tile_p, L), lambda i: (i, 0)),
        ),
        compiler_params=pltpu.CompilerParams(
            dimension_semantics=("parallel",),
            vmem_limit_bytes=vmem_limit,
        ),
        cost_estimate=pl.CostEstimate(
            flops=len(shifts) * P * L,
            transcendentals=0,
            bytes_accessed=2 * P * L * itemsize + 4 * L,
        ),
    )(jnp.asarray(d_map), x2)
    return out2.reshape(N, C, H, W)


if __name__ == "__main__":
    key = jax.random.PRNGKey(0)
    N, C, H, W = 2, 4, 16, 16
    x = jax.random.uniform(key, (N, C, H, W), dtype=jnp.float32)
    M = 9.0  # -> shear angle = 359/16*9 - 180 = 21.9375 degrees
    out = shear_y(x, M)
    jax.block_until_ready(out)
    assert out.shape == x.shape and out.dtype == x.dtype

    # Host-side reference using the same nearest-neighbour inverse map.
    angle = 359.0 / 16.0 * M - 180.0
    _, _, src_i, inb = _shear_index_map(angle, H, W)
    xn = np.asarray(x).reshape(N * C, H, W)
    sc = np.clip(src_i, 0, H - 1)
    exp = np.where(inb[None], xn[:, sc, np.arange(W)[None, :]], 0).astype(xn.dtype)
    assert np.array_equal(np.asarray(out).reshape(N * C, H, W), exp)

    # Also exercise the fast paths (all-fill near -90 deg, identity at 0 deg).
    z = shear_y(x, 4.0107)   # angle ~= -90 deg -> all rows OOB -> zeros
    jax.block_until_ready(z)
    assert np.array_equal(np.asarray(z), np.zeros_like(np.asarray(x)))
    ident = shear_y(x, 8.022284122562675)  # angle ~= 0 deg -> identity
    jax.block_until_ready(ident)
    assert np.array_equal(np.asarray(ident), np.asarray(x))

    print("KERNEL_OK")
</pallas_src>

<mosaic_0001>
module attributes {stable_mosaic.version = 11 : i64} {
  func.func @_shear_y_kernel(%arg0: i32, %arg1: memref<1x256xi32, #tpu.memory_space<vmem>>, %arg2: memref<8x256xf32, #tpu.memory_space<vmem>>, %arg3: memref<8x256xf32, #tpu.memory_space<vmem>>) attributes {dimension_semantics = [#tpu.dimension_semantics<parallel>], iteration_bounds = array<i64: 1>, scalar_prefetch = 0 : i64, scratch_operands = 0 : i64, tpu.core_type = #tpu.core_type<tc>, window_params = [{pipeline_mode = #tpu.pipeline_mode<synchronous>, transform_indices = @transform_0, window_bounds = array<i64: 1, 256>}, {transform_indices = @transform_1, window_bounds = array<i64: 8, 256>}, {transform_indices = @transform_2, window_bounds = array<i64: 8, 256>}]} {
    %c0 = arith.constant 0 : index
    %c0_0 = arith.constant 0 : index
    %0 = vector.load %arg1[%c0, %c0_0] : memref<1x256xi32, #tpu.memory_space<vmem>>, vector<1x256xi32>
    %c0_1 = arith.constant 0 : index
    %c0_2 = arith.constant 0 : index
    %1 = vector.load %arg2[%c0_1, %c0_2] : memref<8x256xf32, #tpu.memory_space<vmem>>, vector<8x256xf32>
    %cst = arith.constant 0.000000e+00 : f32
    %2 = vector.broadcast %cst : f32 to vector<8x256xf32>
    %c48_i32 = arith.constant 48 : i32
    %3 = tpu.dynamic_rotate %1 by %c48_i32 dim 1 : vector<8x256xf32>, i32 -> vector<8x256xf32>
    %c-3_i32 = arith.constant -3 : i32
    %4 = vector.broadcast %c-3_i32 : i32 to vector<1x256xi32>
    %5 = arith.cmpi eq, %0, %4 : vector<1x256xi32>
    %6 = vector.shape_cast %5 : vector<1x256xi1> to vector<1x256xi1>
    %7 = vector.broadcast %6 : vector<1x256xi1> to vector<8x256xi1>
    %8 = arith.select %7, %3, %2 : vector<8x256xi1>, vector<8x256xf32>
    %c32_i32 = arith.constant 32 : i32
    %9 = tpu.dynamic_rotate %1 by %c32_i32 dim 1 : vector<8x256xf32>, i32 -> vector<8x256xf32>
    %c-2_i32 = arith.constant -2 : i32
    %10 = vector.broadcast %c-2_i32 : i32 to vector<1x256xi32>
    %11 = arith.cmpi eq, %0, %10 : vector<1x256xi32>
    %12 = vector.shape_cast %11 : vector<1x256xi1> to vector<1x256xi1>
    %13 = vector.broadcast %12 : vector<1x256xi1> to vector<8x256xi1>
    %14 = arith.select %13, %9, %8 : vector<8x256xi1>, vector<8x256xf32>
    %c16_i32 = arith.constant 16 : i32
    %15 = tpu.dynamic_rotate %1 by %c16_i32 dim 1 : vector<8x256xf32>, i32 -> vector<8x256xf32>
    %c-1_i32 = arith.constant -1 : i32
    %16 = vector.broadcast %c-1_i32 : i32 to vector<1x256xi32>
    %17 = arith.cmpi eq, %0, %16 : vector<1x256xi32>
    %18 = vector.shape_cast %17 : vector<1x256xi1> to vector<1x256xi1>
    %19 = vector.broadcast %18 : vector<1x256xi1> to vector<8x256xi1>
    %20 = arith.select %19, %15, %14 : vector<8x256xi1>, vector<8x256xf32>
    %c0_i32 = arith.constant 0 : i32
    %21 = vector.broadcast %c0_i32 : i32 to vector<1x256xi32>
    %22 = arith.cmpi eq, %0, %21 : vector<1x256xi32>
    %23 = vector.shape_cast %22 : vector<1x256xi1> to vector<1x256xi1>
    %24 = vector.broadcast %23 : vector<1x256xi1> to vector<8x256xi1>
    %25 = arith.select %24, %1, %20 : vector<8x256xi1>, vector<8x256xf32>
    %c240_i32 = arith.constant 240 : i32
    %26 = tpu.dynamic_rotate %1 by %c240_i32 dim 1 : vector<8x256xf32>, i32 -> vector<8x256xf32>
    %c1_i32 = arith.constant 1 : i32
    %27 = vector.broadcast %c1_i32 : i32 to vector<1x256xi32>
    %28 = arith.cmpi eq, %0, %27 : vector<1x256xi32>
    %29 = vector.shape_cast %28 : vector<1x256xi1> to vector<1x256xi1>
    %30 = vector.broadcast %29 : vector<1x256xi1> to vector<8x256xi1>
    %31 = arith.select %30, %26, %25 : vector<8x256xi1>, vector<8x256xf32>
    %c224_i32 = arith.constant 224 : i32
    %32 = tpu.dynamic_rotate %1 by %c224_i32 dim 1 : vector<8x256xf32>, i32 -> vector<8x256xf32>
    %c2_i32 = arith.constant 2 : i32
    %33 = vector.broadcast %c2_i32 : i32 to vector<1x256xi32>
    %34 = arith.cmpi eq, %0, %33 : vector<1x256xi32>
    %35 = vector.shape_cast %34 : vector<1x256xi1> to vector<1x256xi1>
    %36 = vector.broadcast %35 : vector<1x256xi1> to vector<8x256xi1>
    %37 = arith.select %36, %32, %31 : vector<8x256xi1>, vector<8x256xf32>
    %c208_i32 = arith.constant 208 : i32
    %38 = tpu.dynamic_rotate %1 by %c208_i32 dim 1 : vector<8x256xf32>, i32 -> vector<8x256xf32>
    %c3_i32 = arith.constant 3 : i32
    %39 = vector.broadcast %c3_i32 : i32 to vector<1x256xi32>
    %40 = arith.cmpi eq, %0, %39 : vector<1x256xi32>
    %41 = vector.shape_cast %40 : vector<1x256xi1> to vector<1x256xi1>
    %42 = vector.broadcast %41 : vector<1x256xi1> to vector<8x256xi1>
    %43 = arith.select %42, %38, %37 : vector<8x256xi1>, vector<8x256xf32>
    %c0_3 = arith.constant 0 : index
    %c0_4 = arith.constant 0 : index
    %44 = vector.load %arg3[%c0_3, %c0_4] : memref<8x256xf32, #tpu.memory_space<vmem>>, vector<8x256xf32>
    tpu.vector_store %arg3[%c0_3, %c0_4], %43 {strides = array<i32>} : memref<8x256xf32, #tpu.memory_space<vmem>>, vector<8x256xf32>,
    return
  }
  func.func @transform_0(%arg0: i32) -> (i32, i32) {
    %c0_i32 = arith.constant 0 : i32
    %c0_i32_0 = arith.constant 0 : i32
    %c0_i32_1 = arith.constant 0 : i32
    return %c0_i32, %c0_i32_0 : i32, i32
  }
  func.func @transform_1(%arg0: i32) -> (i32, i32) {
    %c0_i32 = arith.constant 0 : i32
    %c0_i32_0 = arith.constant 0 : i32
    return %arg0, %c0_i32 : i32, i32
  }
  func.func @transform_2(%arg0: i32) -> (i32, i32) {
    %c0_i32 = arith.constant 0 : i32
    %c0_i32_0 = arith.constant 0 : i32
    return %arg0, %c0_i32 : i32, i32
  }
}

</mosaic_0001>

<llo_original>
// kernel: tpu_custom_call.1
$region0: #{tpu_custom_call.1}
  #allocation0 [shape = 'u32[]', space=smem, size = 0x4, offset = 0x4, fixed_abs, tag = 'smem constant byte address 0x4 - core index']
  #allocation1 [shape = 'u32[144,128]{1,0:T(1,128)}', space=vmem, size = 0x12000, scoped, tag = 'internal scratch']
  %s0 = inlined_call_operand.hbm [shape: s32[1,256], index: 0, kind: input, shape index: {}]
  %s1 = inlined_call_operand.hbm [shape: f32[8,256], index: 1, kind: input, shape index: {}]
  %s2 = inlined_call_operand.hbm [shape: f32[8,256], index: 2, kind: output, shape index: {}]
  %s3 = sld [smem:[#allocation0]]
  $region26: #{tpu_custom_call.1} parent=0
    _
  %s5 = ssub.s32 1, %s3
  %s6 = scalar_select 0, %s5, %s3
  $region1: #{tpu_custom_call.1} parent=0
    #allocation2 [shape = 'u8[1024]{0}', space=vmem, size = 0x400, scoped, tag = 'input window, operand 0, single buffered']
    #allocation3 [shape = 's32[1]{0}', space=sflag, size = 0x4, scoped, tag = 'scoped memory for tpu_custom_call.1']
    #allocation4 [shape = 's32[1]{0}', space=sflag, size = 0x4, scoped, tag = 'scoped memory for tpu_custom_call.1']
    #allocation5 [shape = 'u8[8192]{0}', space=vmem, size = 0x2000, scoped, tag = 'input window, operand 1, single buffered']
    #allocation6 [shape = 's32[1]{0}', space=sflag, size = 0x4, scoped, tag = 'scoped memory for tpu_custom_call.1']
    #allocation7 [shape = 'u8[8192]{0}', space=vmem, size = 0x2000, scoped, tag = 'output window, operand 0, single buffered']
    %7 = vsyncpa [#allocation3], 0
    %8 = vsyncpa [#allocation6], 0
    %9 = vsyncpa [#allocation4], 0
    // Predicated region
    $region2: #{tpu_custom_call.1} parent=1 // pred_check
      _
    $region3: #{tpu_custom_call.1} parent=1 // pred_check_branch
      %11 = sbr.rel (0) target = $region5
    $region4: #{tpu_custom_call.1} parent=1 // pred_region
      %s13 = ssub.s32 32, 32
      %14 = vsyncadd [#allocation3], %s13
      %s16 = sshll.u32 [#allocation2], 4
      %s17 = int_to_ptr.vmem [resolvable:$true] %s16
      %19 = dma.hbm_to_vmem [thread:$0]  %s0, 32, %s17, [#allocation3]
    $region5: #{tpu_custom_call.1} parent=1 // pred_fallthru
      _
    // Predicated region
    $region6: #{tpu_custom_call.1} parent=1 // pred_check
      _
    $region7: #{tpu_custom_call.1} parent=1 // pred_check_branch
      %21 = sbr.rel (0) target = $region9
    $region8: #{tpu_custom_call.1} parent=1 // pred_region
      %s23 = ssub.s32 256, 256
      %24 = vsyncadd [#allocation6], %s23
      %s26 = sshll.u32 [#allocation5], 4
      %s27 = int_to_ptr.vmem [resolvable:$true] %s26
      %29 = dma.hbm_to_vmem [thread:$0]  %s1, 256, %s27, [#allocation6]
    $region9: #{tpu_custom_call.1} parent=1 // pred_fallthru
      _
    // Predicated region
    $region10: #{tpu_custom_call.1} parent=1 // pred_check
      _
    $region11: #{tpu_custom_call.1} parent=1 // pred_check_branch
      %31 = sbr.rel (0) target = $region13
    $region12: #{tpu_custom_call.1} parent=1 // pred_region
      %32 = dma.done [#allocation3], 32
    $region13: #{tpu_custom_call.1} parent=1 // pred_fallthru
      _
    // Predicated region
    $region14: #{tpu_custom_call.1} parent=1 // pred_check
      _
    $region15: #{tpu_custom_call.1} parent=1 // pred_check_branch
      %34 = sbr.rel (0) target = $region17
    $region16: #{tpu_custom_call.1} parent=1 // pred_region
      %35 = dma.done [#allocation6], 256
    $region17: #{tpu_custom_call.1} parent=1 // pred_fallthru
      _
    %v36 = vld [vmem:[#allocation2] sm:$0x3]
    %v37 = vld [vmem:[#allocation5] sm:$0xff]
    %v38 = vld [vmem:[#allocation5 + $0x8] sm:$0xff]
    %39 = vrot.lane.b32.xlu0 %v37, 48
    %v40 = vpop.permute.xlu0 %39
    %41 = vrot.lane.b32.xlu0 %v38, 48
    %v42 = vpop.permute.xlu0 %41
    %v43 = vlaneseq
    %v44 = vand.u32 %v43, 127
    %vm45 = vcmp.lt.s32.totalorder %v44, 48
    %v46 = vsel %vm45, %v40, %v42
    %v47 = vsel %vm45, %v42, %v40
    %vm48 = vcmp.eq.s32.totalorder %v36, 4294967293
    %v49 = vsel %vm48, 1, 0
    %v50 = vlaneseq
    %v51 = vshrl.u32 %v50, 7
    %v52 = vsub.s32 0, %v51
    %v53 = vrot.slane %v49, %v52
    %v54 = vlaneseq
    %v55 = vshrl.u32 %v54, 7
    %v56 = vsub.s32 1, %v55
    %v57 = vrot.slane %v49, %v56
    %vm58 = vcmp.eq.s32.totalorder %v53, 1
    %vm59 = vcmp.eq.s32.totalorder %v57, 1
    %v60 = vsel %vm58, %v47, 0.0
    %v61 = vsel %vm59, %v46, 0.0
    %62 = vrot.lane.b32.xlu0 %v37, 32
    %v63 = vpop.permute.xlu0 %62
    %64 = vrot.lane.b32.xlu0 %v38, 32
    %v65 = vpop.permute.xlu0 %64
    %vm66 = vcmp.lt.s32.totalorder %v44, 32
    %v67 = vsel %vm66, %v63, %v65
    %v68 = vsel %vm66, %v65, %v63
    %vm69 = vcmp.eq.s32.totalorder %v36, 4294967294
    %v70 = vsel %vm69, 1, 0
    %v71 = vlaneseq
    %v72 = vshrl.u32 %v71, 7
    %v73 = vsub.s32 0, %v72
    %v74 = vrot.slane %v70, %v73
    %v75 = vlaneseq
    %v76 = vshrl.u32 %v75, 7
    %v77 = vsub.s32 1, %v76
    %v78 = vrot.slane %v70, %v77
    %vm79 = vcmp.eq.s32.totalorder %v74, 1
    %vm80 = vcmp.eq.s32.totalorder %v78, 1
    %v81 = vsel %vm79, %v68, %v60
    %v82 = vsel %vm80, %v67, %v61
    %83 = vrot.lane.b32.xlu0 %v37, 16
    %v84 = vpop.permute.xlu0 %83
    %85 = vrot.lane.b32.xlu0 %v38, 16
    %v86 = vpop.permute.xlu0 %85
    %vm87 = vcmp.lt.s32.totalorder %v44, 16
    %v88 = vsel %vm87, %v84, %v86
    %v89 = vsel %vm87, %v86, %v84
    %vm90 = vcmp.eq.s32.totalorder %v36, 4294967295
    %v91 = vsel %vm90, 1, 0
    %v92 = vlaneseq
    %v93 = vshrl.u32 %v92, 7
    %v94 = vsub.s32 0, %v93
    %v95 = vrot.slane %v91, %v94
    %v96 = vlaneseq
    %v97 = vshrl.u32 %v96, 7
    %v98 = vsub.s32 1, %v97
    %v99 = vrot.slane %v91, %v98
    %vm100 = vcmp.eq.s32.totalorder %v95, 1
    %vm101 = vcmp.eq.s32.totalorder %v99, 1
    %v102 = vsel %vm100, %v89, %v81
    %v103 = vsel %vm101, %v88, %v82
    %vm104 = vcmp.eq.s32.totalorder %v36, 0
    %v105 = vsel %vm104, 1, 0
    %v106 = vlaneseq
    %v107 = vshrl.u32 %v106, 7
    %v108 = vsub.s32 0, %v107
    %v109 = vrot.slane %v105, %v108
    %v110 = vlaneseq
    %v111 = vshrl.u32 %v110, 7
    %v112 = vsub.s32 1, %v111
    %v113 = vrot.slane %v105, %v112
    %vm114 = vcmp.eq.s32.totalorder %v109, 1
    %vm115 = vcmp.eq.s32.totalorder %v113, 1
    %v116 = vsel %vm114, %v37, %v102
    %v117 = vsel %vm115, %v38, %v103
    %118 = vrot.lane.b32.xlu0 %v37, 112
    %v119 = vpop.permute.xlu0 %118
    %120 = vrot.lane.b32.xlu0 %v38, 112
    %v121 = vpop.permute.xlu0 %120
    %vm122 = vcmp.lt.s32.totalorder %v44, 112
    %v123 = vsel %vm122, %v119, %v121
    %v124 = vsel %vm122, %v121, %v119
    %vm125 = vcmp.eq.s32.totalorder %v36, 1
    %v126 = vsel %vm125, 1, 0
    %v127 = vlaneseq
    %v128 = vshrl.u32 %v127, 7
    %v129 = vsub.s32 0, %v128
    %v130 = vrot.slane %v126, %v129
    %v131 = vlaneseq
    %v132 = vshrl.u32 %v131, 7
    %v133 = vsub.s32 1, %v132
    %v134 = vrot.slane %v126, %v133
    %vm135 = vcmp.eq.s32.totalorder %v130, 1
    %vm136 = vcmp.eq.s32.totalorder %v134, 1
    %v137 = vsel %vm135, %v123, %v116
    %v138 = vsel %vm136, %v124, %v117
    %139 = vrot.lane.b32.xlu0 %v37, 96
    %v140 = vpop.permute.xlu0 %139
    %141 = vrot.lane.b32.xlu0 %v38, 96
    %v142 = vpop.permute.xlu0 %141
    %vm143 = vcmp.lt.s32.totalorder %v44, 96
    %v144 = vsel %vm143, %v140, %v142
    %v145 = vsel %vm143, %v142, %v140
    %vm146 = vcmp.eq.s32.totalorder %v36, 2
    %v147 = vsel %vm146, 1, 0
    %v148 = vlaneseq
    %v149 = vshrl.u32 %v148, 7
    %v150 = vsub.s32 0, %v149
    %v151 = vrot.slane %v147, %v150
    %v152 = vlaneseq
    %v153 = vshrl.u32 %v152, 7
    %v154 = vsub.s32 1, %v153
    %v155 = vrot.slane %v147, %v154
    %vm156 = vcmp.eq.s32.totalorder %v151, 1
    %vm157 = vcmp.eq.s32.totalorder %v155, 1
    %v158 = vsel %vm156, %v144, %v137
    %v159 = vsel %vm157, %v145, %v138
    %160 = vrot.lane.b32.xlu0 %v37, 80
    %v161 = vpop.permute.xlu0 %160
    %162 = vrot.lane.b32.xlu0 %v38, 80
    %v163 = vpop.permute.xlu0 %162
    %vm164 = vcmp.lt.s32.totalorder %v44, 80
    %v165 = vsel %vm164, %v161, %v163
    %v166 = vsel %vm164, %v163, %v161
    %vm167 = vcmp.eq.s32.totalorder %v36, 3
    %v168 = vsel %vm167, 1, 0
    %v169 = vlaneseq
    %v170 = vshrl.u32 %v169, 7
    %v171 = vsub.s32 0, %v170
    %v172 = vrot.slane %v168, %v171
    %v173 = vlaneseq
    %v174 = vshrl.u32 %v173, 7
    %v175 = vsub.s32 1, %v174
    %v176 = vrot.slane %v168, %v175
    %vm177 = vcmp.eq.s32.totalorder %v172, 1
    %vm178 = vcmp.eq.s32.totalorder %v176, 1
    %v179 = vsel %vm177, %v165, %v158
    %v180 = vsel %vm178, %v166, %v159
    %181 = vst [vmem:[#allocation7] sm:$0xff] %v179
    %182 = vst [vmem:[#allocation7 + $0x8] sm:$0xff] %v180
    // Predicated region
    $region18: #{tpu_custom_call.1} parent=1 // pred_check
      _
    $region19: #{tpu_custom_call.1} parent=1 // pred_check_branch
      %184 = sbr.rel (0) target = $region21
    $region20: #{tpu_custom_call.1} parent=1 // pred_region
      %s186 = ssub.s32 256, 256
      %187 = vsyncadd [#allocation4], %s186
      %s189 = sshll.u32 [#allocation7], 4
      %s190 = int_to_ptr.vmem [resolvable:$true] %s189
      %192 = dma.vmem_to_hbm [thread:$0]  %s190, 256, %s2, [#allocation4]
    $region21: #{tpu_custom_call.1} parent=1 // pred_fallthru
      _
    // Predicated region
    $region22: #{tpu_custom_call.1} parent=1 // pred_check
      _
    $region23: #{tpu_custom_call.1} parent=1 // pred_check_branch
      %194 = sbr.rel (0) target = $region25
    $region24: #{tpu_custom_call.1} parent=1 // pred_region
      %195 = dma.done [#allocation4], 256
    $region25: #{tpu_custom_call.1} parent=1 // pred_fallthru
      _
    %196 = vsyncpa [#allocation3], 1
    %197 = vsyncpa [#allocation6], 1
    %198 = vsyncpa [#allocation4], 1

</llo_original>
